<compile_context>
chip_gen: v7x
topology: tpu7x:2x2x1
jax: 0.10.0
libtpu: 0.0.40
codegen_flags: <defaults>
</compile_context>

<pallas_src>
import functools

import jax
import jax.numpy as jnp
from jax.experimental import pallas as pl
from jax.experimental.pallas import tpu as pltpu


def _sigmoid(x):
    return 1.0 / (1.0 + jnp.exp(-x))


def _round_up(x, m):
    return (x + m - 1) // m * m


def _mlp_kernel(z_ref, w1_ref, b1_ref, w2_ref, b2_ref, h_ref, ht_ref):
    """h = sigmoid(relu(z @ W1 + b1) @ W2 + b2) for one row tile; also h^T."""
    a = jnp.dot(z_ref[...], w1_ref[...], preferred_element_type=jnp.float32)
    a = jnp.maximum(a + b1_ref[...], 0.0)                       # relu(fc)
    a = jnp.dot(a, w2_ref[...], preferred_element_type=jnp.float32)
    h = _sigmoid(a + b2_ref[...])                               # sigmoid(fc2)
    h_ref[...] = h
    ht_ref[...] = h.T                                           # lane-dense RHS copy


def _decoder_kernel(h_ref, ht_ref, adj_ref, *, apply_sigmoid):
    """adj[i, j] tile = sigmoid(h_i @ h_j^T)."""
    adj = jnp.dot(h_ref[...], ht_ref[...], preferred_element_type=jnp.float32)
    if apply_sigmoid:
        adj = _sigmoid(adj)
    adj_ref[...] = adj.astype(adj_ref.dtype)


def _inner_product_decoder_2d(z, fc_w, fc_b, fc2_w, fc2_b, *, sigmoid=True,
                              tile=512):
    """z: [N, input_dim].  fc_w: [H, input_dim], fc2_w: [H, H] (torch layout).
    Returns [N, N]."""
    n, d = z.shape
    hdim = fc_w.shape[0]
    assert fc_w.shape == (hdim, d) and fc2_w.shape == (hdim, hdim)

    # Row tile: whole (8-aligned) array when small, otherwise `tile` rows.
    if n <= tile:
        tm = _round_up(max(n, 8), 8)
    else:
        tm = tile
    n_pad = _round_up(n, tm)

    zp = z.astype(jnp.float32)
    if n_pad != n:
        zp = jnp.pad(zp, ((0, n_pad - n), (0, 0)))  # padded rows sliced off below

    w1 = fc_w.T.astype(jnp.float32)                 # [D, H]
    b1 = fc_b.reshape(1, hdim).astype(jnp.float32)
    w2 = fc2_w.T.astype(jnp.float32)                # [H, H]
    b2 = fc2_b.reshape(1, hdim).astype(jnp.float32)

    g = n_pad // tm

    # ---- phase 1: h = MLP(z) and h^T ------------------------------------
    mlp_cost = pl.CostEstimate(
        flops=int(2 * n_pad * (d * hdim + hdim * hdim)),
        transcendentals=int(n_pad * hdim),
        bytes_accessed=int(4 * (n_pad * d + 2 * n_pad * hdim
                                + g * (d * hdim + hdim * hdim + 2 * hdim))),
    )
    h, ht = pl.pallas_call(
        _mlp_kernel,
        out_shape=(jax.ShapeDtypeStruct((n_pad, hdim), jnp.float32),
                   jax.ShapeDtypeStruct((hdim, n_pad), jnp.float32)),
        grid_spec=pltpu.PrefetchScalarGridSpec(
            num_scalar_prefetch=0,
            grid=(g,),
            in_specs=[
                pl.BlockSpec((tm, d), lambda i: (i, 0)),        # z row tile
                pl.BlockSpec((d, hdim), lambda i: (0, 0)),      # fc weight^T
                pl.BlockSpec((1, hdim), lambda i: (0, 0)),      # fc bias
                pl.BlockSpec((hdim, hdim), lambda i: (0, 0)),   # fc2 weight^T
                pl.BlockSpec((1, hdim), lambda i: (0, 0)),      # fc2 bias
            ],
            out_specs=[
                pl.BlockSpec((tm, hdim), lambda i: (i, 0)),     # h
                pl.BlockSpec((hdim, tm), lambda i: (0, i)),     # h^T (lane-dense)
            ],
        ),
        compiler_params=pltpu.CompilerParams(
            dimension_semantics=("parallel",),
        ),
        cost_estimate=mlp_cost,
    )(zp, w1, b1, w2, b2)

    # ---- phase 2: adj = sigmoid(h @ h^T) ---------------------------------
    dec_cost = pl.CostEstimate(
        flops=int(2 * n_pad * n_pad * hdim),
        transcendentals=int(n_pad * n_pad) if sigmoid else 0,
        bytes_accessed=int(4 * (2 * g * n_pad * hdim + n_pad * n_pad)),
    )
    dec_kernel = functools.partial(_decoder_kernel, apply_sigmoid=sigmoid)
    adj = pl.pallas_call(
        dec_kernel,
        out_shape=jax.ShapeDtypeStruct((n_pad, n_pad), jnp.float32),
        grid_spec=pltpu.PrefetchScalarGridSpec(
            num_scalar_prefetch=0,
            grid=(g, g),
            in_specs=[
                pl.BlockSpec((tm, hdim), lambda i, j: (i, 0)),  # h rows, tile i
                pl.BlockSpec((hdim, tm), lambda i, j: (0, j)),  # h^T cols, tile j
            ],
            out_specs=pl.BlockSpec((tm, tm), lambda i, j: (i, j)),
        ),
        compiler_params=pltpu.CompilerParams(
            dimension_semantics=("parallel", "parallel"),
            vmem_limit_bytes=32 * 1024 * 1024,
        ),
        cost_estimate=dec_cost,
    )(h, ht)

    return adj[:n, :n]


def inner_product_decoder_mlp(z, fc_w, fc_b, fc2_w, fc2_b, *, sigmoid=True,
                              tile=512):
    """Forward of InnerProductDecoderMLP (eval mode).  Supports 2-D [N, D]
    and 3-D batched [B, N, D] inputs (torch.bmm path)."""
    if z.ndim == 3:
        return jnp.stack([
            _inner_product_decoder_2d(z[b], fc_w, fc_b, fc2_w, fc2_b,
                                      sigmoid=sigmoid, tile=tile)
            for b in range(z.shape[0])
        ])
    return _inner_product_decoder_2d(z, fc_w, fc_b, fc2_w, fc2_b,
                                     sigmoid=sigmoid, tile=tile)


def inner_product_decoder_ref(z, fc_w, fc_b, fc2_w, fc2_b, sigmoid=True):
    """Plain-JAX reference reproducing the torch forward (eval mode)."""
    h = jnp.maximum(z @ fc_w.T + fc_b, 0.0)
    h = _sigmoid(h @ fc2_w.T + fc2_b)
    if z.ndim == 3:
        adj = jnp.einsum('bnd,bmd->bnm', h, h)
    else:
        adj = h @ h.T
    return _sigmoid(adj) if sigmoid else adj


if __name__ == "__main__":
    key = jax.random.PRNGKey(0)
    k_z, k_w1, k_w2 = jax.random.split(key, 3)

    N, INPUT_DIM, HIDDEN = 64, 16, 32
    z = jax.random.normal(k_z, (N, INPUT_DIM), dtype=jnp.float32)

    # Xavier-uniform weights, zero biases (matches reset_parameters()).
    lim1 = (6.0 / (INPUT_DIM + HIDDEN)) ** 0.5
    lim2 = (6.0 / (HIDDEN + HIDDEN)) ** 0.5
    fc_w = jax.random.uniform(k_w1, (HIDDEN, INPUT_DIM), jnp.float32, -lim1, lim1)
    fc_b = jnp.zeros((HIDDEN,), jnp.float32)
    fc2_w = jax.random.uniform(k_w2, (HIDDEN, HIDDEN), jnp.float32, -lim2, lim2)
    fc2_b = jnp.zeros((HIDDEN,), jnp.float32)

    adj = inner_product_decoder_mlp(z, fc_w, fc_b, fc2_w, fc2_b, sigmoid=True)
    adj = jax.block_until_ready(adj)

    ref = inner_product_decoder_ref(z, fc_w, fc_b, fc2_w, fc2_b, sigmoid=True)
    assert adj.shape == (N, N)
    assert jnp.allclose(adj, ref, atol=1e-4, rtol=1e-4), "mismatch vs reference"

    print("KERNEL_OK")
</pallas_src>

<mosaic_0001>
module attributes {stable_mosaic.version = 11 : i64} {
  func.func @_mlp_kernel(%arg0: i32, %arg1: memref<64x16xf32, #tpu.memory_space<vmem>>, %arg2: memref<16x32xf32, #tpu.memory_space<vmem>>, %arg3: memref<1x32xf32, #tpu.memory_space<vmem>>, %arg4: memref<32x32xf32, #tpu.memory_space<vmem>>, %arg5: memref<1x32xf32, #tpu.memory_space<vmem>>, %arg6: memref<64x32xf32, #tpu.memory_space<vmem>>, %arg7: memref<32x64xf32, #tpu.memory_space<vmem>>) attributes {dimension_semantics = [#tpu.dimension_semantics<parallel>], iteration_bounds = array<i64: 1>, scalar_prefetch = 0 : i64, scratch_operands = 0 : i64, tpu.core_type = #tpu.core_type<tc>, window_params = [{transform_indices = @transform_0, window_bounds = array<i64: 64, 16>}, {pipeline_mode = #tpu.pipeline_mode<synchronous>, transform_indices = @transform_1, window_bounds = array<i64: 16, 32>}, {pipeline_mode = #tpu.pipeline_mode<synchronous>, transform_indices = @transform_2, window_bounds = array<i64: 1, 32>}, {pipeline_mode = #tpu.pipeline_mode<synchronous>, transform_indices = @transform_3, window_bounds = array<i64: 32, 32>}, {pipeline_mode = #tpu.pipeline_mode<synchronous>, transform_indices = @transform_4, window_bounds = array<i64: 1, 32>}, {transform_indices = @transform_5, window_bounds = array<i64: 64, 32>}, {transform_indices = @transform_6, window_bounds = array<i64: 32, 64>}]} {
    %c0 = arith.constant 0 : index
    %c0_0 = arith.constant 0 : index
    %0 = vector.load %arg1[%c0, %c0_0] : memref<64x16xf32, #tpu.memory_space<vmem>>, vector<64x16xf32>
    %c0_1 = arith.constant 0 : index
    %c0_2 = arith.constant 0 : index
    %1 = vector.load %arg2[%c0_1, %c0_2] : memref<16x32xf32, #tpu.memory_space<vmem>>, vector<16x32xf32>
    %cst = arith.constant dense<0.000000e+00> : vector<64x32xf32>
    %2 = tpu.matmul %0, %1, %cst {dimension_numbers = #tpu.dot_dimension_numbers<[1], [0], [0], [1], [0, 0, 1, 1], [], []>} : vector<64x16xf32>, vector<16x32xf32>, vector<64x32xf32> -> vector<64x32xf32>
    %c0_3 = arith.constant 0 : index
    %c0_4 = arith.constant 0 : index
    %3 = vector.load %arg3[%c0_3, %c0_4] : memref<1x32xf32, #tpu.memory_space<vmem>>, vector<1x32xf32>
    %4 = vector.broadcast %3 : vector<1x32xf32> to vector<64x32xf32>
    %5 = arith.addf %2, %4 : vector<64x32xf32>
    %cst_5 = arith.constant 0.000000e+00 : f32
    %6 = vector.broadcast %cst_5 : f32 to vector<64x32xf32>
    %7 = arith.maximumf %5, %6 : vector<64x32xf32>
    %c0_6 = arith.constant 0 : index
    %c0_7 = arith.constant 0 : index
    %8 = vector.load %arg4[%c0_6, %c0_7] : memref<32x32xf32, #tpu.memory_space<vmem>>, vector<32x32xf32>
    %cst_8 = arith.constant dense<0.000000e+00> : vector<64x32xf32>
    %9 = tpu.matmul %7, %8, %cst_8 {dimension_numbers = #tpu.dot_dimension_numbers<[1], [0], [0], [1], [0, 0, 1, 1], [], []>} : vector<64x32xf32>, vector<32x32xf32>, vector<64x32xf32> -> vector<64x32xf32>
    %c0_9 = arith.constant 0 : index
    %c0_10 = arith.constant 0 : index
    %10 = vector.load %arg5[%c0_9, %c0_10] : memref<1x32xf32, #tpu.memory_space<vmem>>, vector<1x32xf32>
    %11 = vector.broadcast %10 : vector<1x32xf32> to vector<64x32xf32>
    %12 = arith.addf %9, %11 : vector<64x32xf32>
    %cst_11 = arith.constant 0.000000e+00 : f32
    %13 = vector.broadcast %cst_11 : f32 to vector<64x32xf32>
    %14 = arith.subf %13, %12 : vector<64x32xf32>
    %15 = math.exp %14 : vector<64x32xf32>
    %cst_12 = arith.constant 1.000000e+00 : f32
    %16 = vector.broadcast %cst_12 : f32 to vector<64x32xf32>
    %17 = arith.addf %16, %15 : vector<64x32xf32>
    %cst_13 = arith.constant 1.000000e+00 : f32
    %18 = vector.broadcast %cst_13 : f32 to vector<64x32xf32>
    %19 = arith.divf %18, %17 : vector<64x32xf32>
    %c0_14 = arith.constant 0 : index
    %c0_15 = arith.constant 0 : index
    %20 = vector.load %arg6[%c0_14, %c0_15] : memref<64x32xf32, #tpu.memory_space<vmem>>, vector<64x32xf32>
    tpu.vector_store %arg6[%c0_14, %c0_15], %19 {strides = array<i32>} : memref<64x32xf32, #tpu.memory_space<vmem>>, vector<64x32xf32>,
    %21 = tpu.transpose %19, [1, 0] : vector<64x32xf32> -> vector<32x64xf32>
    %c0_16 = arith.constant 0 : index
    %c0_17 = arith.constant 0 : index
    %22 = vector.load %arg7[%c0_16, %c0_17] : memref<32x64xf32, #tpu.memory_space<vmem>>, vector<32x64xf32>
    tpu.vector_store %arg7[%c0_16, %c0_17], %21 {strides = array<i32>} : memref<32x64xf32, #tpu.memory_space<vmem>>, vector<32x64xf32>,
    return
  }
  func.func @transform_0(%arg0: i32) -> (i32, i32) {
    %c0_i32 = arith.constant 0 : i32
    %c0_i32_0 = arith.constant 0 : i32
    return %arg0, %c0_i32 : i32, i32
  }
  func.func @transform_1(%arg0: i32) -> (i32, i32) {
    %c0_i32 = arith.constant 0 : i32
    %c0_i32_0 = arith.constant 0 : i32
    %c0_i32_1 = arith.constant 0 : i32
    return %c0_i32, %c0_i32_0 : i32, i32
  }
  func.func @transform_2(%arg0: i32) -> (i32, i32) {
    %c0_i32 = arith.constant 0 : i32
    %c0_i32_0 = arith.constant 0 : i32
    %c0_i32_1 = arith.constant 0 : i32
    return %c0_i32, %c0_i32_0 : i32, i32
  }
  func.func @transform_3(%arg0: i32) -> (i32, i32) {
    %c0_i32 = arith.constant 0 : i32
    %c0_i32_0 = arith.constant 0 : i32
    %c0_i32_1 = arith.constant 0 : i32
    return %c0_i32, %c0_i32_0 : i32, i32
  }
  func.func @transform_4(%arg0: i32) -> (i32, i32) {
    %c0_i32 = arith.constant 0 : i32
    %c0_i32_0 = arith.constant 0 : i32
    %c0_i32_1 = arith.constant 0 : i32
    return %c0_i32, %c0_i32_0 : i32, i32
  }
  func.func @transform_5(%arg0: i32) -> (i32, i32) {
    %c0_i32 = arith.constant 0 : i32
    %c0_i32_0 = arith.constant 0 : i32
    return %arg0, %c0_i32 : i32, i32
  }
  func.func @transform_6(%arg0: i32) -> (i32, i32) {
    %c0_i32 = arith.constant 0 : i32
    %c0_i32_0 = arith.constant 0 : i32
    return %c0_i32, %arg0 : i32, i32
  }
}

</mosaic_0001>

<llo_original>
// kernel: tpu_custom_call.1
$region0: #{tpu_custom_call.1}
  #allocation0 [shape = 'u32[]', space=smem, size = 0x4, offset = 0x4, fixed_abs, tag = 'smem constant byte address 0x4 - core index']
  #allocation1 [shape = 'u32[144,128]{1,0:T(1,128)}', space=vmem, size = 0x12000, scoped, tag = 'internal scratch']
  %s0 = inlined_call_operand.vmem [shape: f32[64,16], index: 0, kind: input, shape index: {}]
  %s1 = inlined_call_operand.vmem [shape: f32[16,32], index: 1, kind: input, shape index: {}]
  %s2 = inlined_call_operand.vmem [shape: f32[1,32], index: 2, kind: input, shape index: {}]
  %s3 = inlined_call_operand.vmem [shape: f32[32,32], index: 3, kind: input, shape index: {}]
  %s4 = inlined_call_operand.vmem [shape: f32[1,32], index: 4, kind: input, shape index: {}]
  %s5 = inlined_call_operand.vmem [shape: f32[64,32], index: 5, kind: output, shape index: {0}]
  %s6 = inlined_call_operand.hbm [shape: f32[32,64], index: 6, kind: output, shape index: {1}]
  %7 = xla_tuple %s5, %s6
  %s8 = sld [smem:[#allocation0]]
  $region38: #{tpu_custom_call.1} parent=0
    _
  %s10 = ssub.s32 1, %s8
  %s11 = scalar_select 0, %s10, %s8
  $region1: #{tpu_custom_call.1} parent=0
    #allocation2 [shape = 'u8[16384]{0}', space=vmem, size = 0x4000, scoped, tag = 'output window, operand 1, single buffered']
    #allocation3 [shape = 's32[1]{0}', space=sflag, size = 0x4, scoped, tag = 'scoped memory for tpu_custom_call.1']
    %12 = vsyncpa [#allocation3], 0
    // Predicated region
    $region2: #{tpu_custom_call.1} parent=1 // pred_check
      _
    $region3: #{tpu_custom_call.1} parent=1 // pred_check_branch
      %14 = sbr.rel (0) target = $region5
    $region4: #{tpu_custom_call.1} parent=1 // pred_region
      _
    $region5: #{tpu_custom_call.1} parent=1 // pred_fallthru
      _
    // Predicated region
    $region6: #{tpu_custom_call.1} parent=1 // pred_check
      _
    $region7: #{tpu_custom_call.1} parent=1 // pred_check_branch
      %16 = sbr.rel (0) target = $region9
    $region8: #{tpu_custom_call.1} parent=1 // pred_region
      _
    $region9: #{tpu_custom_call.1} parent=1 // pred_fallthru
      _
    // Predicated region
    $region10: #{tpu_custom_call.1} parent=1 // pred_check
      _
    $region11: #{tpu_custom_call.1} parent=1 // pred_check_branch
      %18 = sbr.rel (0) target = $region13
    $region12: #{tpu_custom_call.1} parent=1 // pred_region
      _
    $region13: #{tpu_custom_call.1} parent=1 // pred_fallthru
      _
    // Predicated region
    $region14: #{tpu_custom_call.1} parent=1 // pred_check
      _
    $region15: #{tpu_custom_call.1} parent=1 // pred_check_branch
      %20 = sbr.rel (0) target = $region17
    $region16: #{tpu_custom_call.1} parent=1 // pred_region
      _
    $region17: #{tpu_custom_call.1} parent=1 // pred_fallthru
      _
    // Predicated region
    $region18: #{tpu_custom_call.1} parent=1 // pred_check
      _
    $region19: #{tpu_custom_call.1} parent=1 // pred_check_branch
      %22 = sbr.rel (0) target = $region21
    $region20: #{tpu_custom_call.1} parent=1 // pred_region
      _
    $region21: #{tpu_custom_call.1} parent=1 // pred_fallthru
      _
    %v23 = vld [vmem:[%s0] sm:$0xff]
    %v24 = vld [vmem:[%s0 + $0x8] sm:$0xff]
    %v25 = vld [vmem:[%s0 + $0x10] sm:$0xff]
    %v26 = vld [vmem:[%s0 + $0x18] sm:$0xff]
    %v27 = vld [vmem:[%s0 + $0x20] sm:$0xff]
    %v28 = vld [vmem:[%s0 + $0x28] sm:$0xff]
    %v29 = vld [vmem:[%s0 + $0x30] sm:$0xff]
    %v30 = vld [vmem:[%s0 + $0x38] sm:$0xff]
    %v31 = vld [vmem:[%s1] sm:$0xff]
    %v32 = vld [vmem:[%s1 + $0x8] sm:$0xff]
    %v33 = vld [vmem:[%s2] sm:$0x1]
    %v35 = vlaneseq
    %v36 = vshrl.u32 %v35, 7
    %v37 = vsub.s32 0, %v36
    %v38 = vrot.slane %v33, %v37
    %vm40 = vcmask 130048
    %v42 = vsel %vm40, %v23, 0
    %v45 = vsel %vm40, %v24, 0
    %v48 = vsel %vm40, %v25, 0
    %v51 = vsel %vm40, %v26, 0
    %v54 = vsel %vm40, %v27, 0
    %v57 = vsel %vm40, %v28, 0
    %v60 = vsel %vm40, %v29, 0
    %v63 = vsel %vm40, %v30, 0
    %65 = vmatprep.subr.mxu0 0.0
    %66 = vmatpush1.msra.mxu0 %v31
    %67 = vmatprep.subr.mxu0 0.0
    %68 = vmatpush1.msra.mxu0 %v32
    %69 = vmatprep.subr.mxu0 0.0
    %70 = vmatpush1.msra.mxu0 0.0
    %71 = vmatprep.subr.mxu0 0.0
    %72 = vmatpush1.msra.mxu0 0.0
    %73 = vmatprep.subr.mxu0 0.0
    %74 = vmatpush1.msra.mxu0 0.0
    %75 = vmatprep.subr.mxu0 0.0
    %76 = vmatpush1.msra.mxu0 0.0
    %77 = vmatprep.subr.mxu0 0.0
    %78 = vmatpush1.msra.mxu0 0.0
    %79 = vmatprep.subr.mxu0 0.0
    %80 = vmatpush1.msra.mxu0 0.0
    %81 = vmatprep.subr.mxu0 0.0
    %82 = vmatpush1.msra.mxu0 0.0
    %83 = vmatprep.subr.mxu0 0.0
    %84 = vmatpush1.msra.mxu0 0.0
    %85 = vmatprep.subr.mxu0 0.0
    %86 = vmatpush1.msra.mxu0 0.0
    %87 = vmatprep.subr.mxu0 0.0
    %88 = vmatpush1.msra.mxu0 0.0
    %89 = vmatprep.subr.mxu0 0.0
    %90 = vmatpush1.msra.mxu0 0.0
    %91 = vmatprep.subr.mxu0 0.0
    %92 = vmatpush1.msra.mxu0 0.0
    %93 = vmatprep.subr.mxu0 0.0
    %94 = vmatpush1.msra.mxu0 0.0
    %95 = vmatprep.subr.mxu0 0.0
    %96 = vmatpush1.msra.mxu0 0.0
    %97 = vmatprep.subr.mxu0 0.0
    %98 = vmatpush1.msra.mxu0 0.0
    %99 = vmatprep.subr.mxu0 0.0
    %100 = vmatpush1.msra.mxu0 0.0
    %101 = vmatprep.subr.mxu0 0.0
    %102 = vmatpush1.msra.mxu0 0.0
    %103 = vmatprep.subr.mxu0 0.0
    %104 = vmatpush1.msra.mxu0 0.0
    %105 = vmatprep.subr.mxu0 0.0
    %106 = vmatpush1.msra.mxu0 0.0
    %107 = vmatprep.subr.mxu0 0.0
    %108 = vmatpush1.msra.mxu0 0.0
    %109 = vmatprep.subr.mxu0 0.0
    %110 = vmatpush1.msra.mxu0 0.0
    %111 = vmatprep.subr.mxu0 0.0
    %112 = vmatpush1.msra.mxu0 0.0
    %113 = vmatprep.subr.mxu0 0.0
    %114 = vmatpush1.msra.mxu0 0.0
    %115 = vmatprep.subr.mxu0 0.0
    %116 = vmatpush1.msra.mxu0 0.0
    %117 = vmatprep.subr.mxu0 0.0
    %118 = vmatpush1.msra.mxu0 0.0
    %119 = vmatprep.subr.mxu0 0.0
    %120 = vmatpush1.msra.mxu0 0.0
    %121 = vmatprep.subr.mxu0 0.0
    %122 = vmatpush1.msra.mxu0 0.0
    %123 = vmatprep.subr.mxu0 0.0
    %124 = vmatpush1.msra.mxu0 0.0
    %125 = vmatprep.subr.mxu0 0.0
    %126 = vmatpush1.msra.mxu0 0.0
    %127 = vmatprep.subr.mxu0 0.0
    %128 = vmatpush1.msra.mxu0 0.0
    %129 = vmatprep.mubr.f32.mxu0 0.0
    %130 = vmatmul.mubr.f32.gmra.mrb[0].mxu0 %v42
    %v131 = vpop.f32.mrb[0].mxu0
    %v132 = vadd.f32 %v38, %v131
    %v133 = vpop.f32.mrb[0].mxu0
    %134 = vmatprep.mubr.f32.mxu0 0.0
    %135 = vmatmul.mubr.f32.gmra.mrb[0].mxu0 %v45
    %v136 = vpop.f32.mrb[0].mxu0
    %v137 = vadd.f32 %v38, %v136
    %v138 = vpop.f32.mrb[0].mxu0
    %139 = vmatprep.mubr.f32.mxu0 0.0
    %140 = vmatmul.mubr.f32.gmra.mrb[0].mxu0 %v48
    %v141 = vpop.f32.mrb[0].mxu0
    %v142 = vadd.f32 %v38, %v141
    %v143 = vpop.f32.mrb[0].mxu0
    %144 = vmatprep.mubr.f32.mxu0 0.0
    %145 = vmatmul.mubr.f32.gmra.mrb[0].mxu0 %v51
    %v146 = vpop.f32.mrb[0].mxu0
    %v147 = vadd.f32 %v38, %v146
    %v148 = vpop.f32.mrb[0].mxu0
    %149 = vmatprep.mubr.f32.mxu0 0.0
    %150 = vmatmul.mubr.f32.gmra.mrb[0].mxu0 %v54
    %v151 = vpop.f32.mrb[0].mxu0
    %v152 = vadd.f32 %v38, %v151
    %v153 = vpop.f32.mrb[0].mxu0
    %154 = vmatprep.mubr.f32.mxu0 0.0
    %155 = vmatmul.mubr.f32.gmra.mrb[0].mxu0 %v57
    %v156 = vpop.f32.mrb[0].mxu0
    %v157 = vadd.f32 %v38, %v156
    %v158 = vpop.f32.mrb[0].mxu0
    %159 = vmatprep.mubr.f32.mxu0 0.0
    %160 = vmatmul.mubr.f32.gmra.mrb[0].mxu0 %v60
    %v161 = vpop.f32.mrb[0].mxu0
    %v162 = vadd.f32 %v38, %v161
    %v163 = vpop.f32.mrb[0].mxu0
    %164 = vmatprep.mubr.f32.mxu0 0.0
    %165 = vmatmul.mubr.f32.gmra.mrb[0].mxu0 %v63
    %v166 = vpop.f32.mrb[0].mxu0
    %v167 = vadd.f32 %v38, %v166
    %v168 = vpop.f32.mrb[0].mxu0
    %169 = vdwg.mxu0
    %v170 = vmax.f32 %v132, 0.0
    %v171 = vmax.f32 %v137, 0.0
    %v172 = vmax.f32 %v142, 0.0
    %v173 = vmax.f32 %v147, 0.0
    %v174 = vmax.f32 %v152, 0.0
    %v175 = vmax.f32 %v157, 0.0
    %v176 = vmax.f32 %v162, 0.0
    %v177 = vmax.f32 %v167, 0.0
    %v178 = vld [vmem:[%s3] sm:$0xff]
    %v179 = vld [vmem:[%s3 + $0x8] sm:$0xff]
    %v180 = vld [vmem:[%s3 + $0x10] sm:$0xff]
    %v181 = vld [vmem:[%s3 + $0x18] sm:$0xff]
    %v182 = vld [vmem:[%s4] sm:$0x1]
    %v184 = vlaneseq
    %v185 = vshrl.u32 %v184, 7
    %v186 = vsub.s32 0, %v185
    %v187 = vrot.slane %v182, %v186
    %vm189 = vcmask 261120
    %v191 = vsel %vm189, %v170, 0
    %v194 = vsel %vm189, %v171, 0
    %v197 = vsel %vm189, %v172, 0
    %v200 = vsel %vm189, %v173, 0
    %v203 = vsel %vm189, %v174, 0
    %v206 = vsel %vm189, %v175, 0
    %v209 = vsel %vm189, %v176, 0
    %v212 = vsel %vm189, %v177, 0
    %214 = vmatprep.subr.mxu0 0.0
    %215 = vmatpush1.msra.mxu0 %v178
    %216 = vmatprep.subr.mxu0 0.0
    %217 = vmatpush1.msra.mxu0 %v179
    %218 = vmatprep.subr.mxu0 0.0
    %219 = vmatpush1.msra.mxu0 %v180
    %220 = vmatprep.subr.mxu0 0.0
    %221 = vmatpush1.msra.mxu0 %v181
    %222 = vmatprep.subr.mxu0 0.0
    %223 = vmatpush1.msra.mxu0 0.0
    %224 = vmatprep.subr.mxu0 0.0
    %225 = vmatpush1.msra.mxu0 0.0
    %226 = vmatprep.subr.mxu0 0.0
    %227 = vmatpush1.msra.mxu0 0.0
    %228 = vmatprep.subr.mxu0 0.0
    %229 = vmatpush1.msra.mxu0 0.0
    %230 = vmatprep.subr.mxu0 0.0
    %231 = vmatpush1.msra.mxu0 0.0
    %232 = vmatprep.subr.mxu0 0.0
    %233 = vmatpush1.msra.mxu0 0.0
    %234 = vmatprep.subr.mxu0 0.0
    %235 = vmatpush1.msra.mxu0 0.0
    %236 = vmatprep.subr.mxu0 0.0
    %237 = vmatpush1.msra.mxu0 0.0
    %238 = vmatprep.subr.mxu0 0.0
    %239 = vmatpush1.msra.mxu0 0.0
    %240 = vmatprep.subr.mxu0 0.0
    %241 = vmatpush1.msra.mxu0 0.0
    %242 = vmatprep.subr.mxu0 0.0
    %243 = vmatpush1.msra.mxu0 0.0
    %244 = vmatprep.subr.mxu0 0.0
    %245 = vmatpush1.msra.mxu0 0.0
    %246 = vmatprep.subr.mxu0 0.0
    %247 = vmatpush1.msra.mxu0 0.0
    %248 = vmatprep.subr.mxu0 0.0
    %249 = vmatpush1.msra.mxu0 0.0
    %250 = vmatprep.subr.mxu0 0.0
    %251 = vmatpush1.msra.mxu0 0.0
    %252 = vmatprep.subr.mxu0 0.0
    %253 = vmatpush1.msra.mxu0 0.0
    %254 = vmatprep.subr.mxu0 0.0
    %255 = vmatpush1.msra.mxu0 0.0
    %256 = vmatprep.subr.mxu0 0.0
    %257 = vmatpush1.msra.mxu0 0.0
    %258 = vmatprep.subr.mxu0 0.0
    %259 = vmatpush1.msra.mxu0 0.0
    %260 = vmatprep.subr.mxu0 0.0
    %261 = vmatpush1.msra.mxu0 0.0
    %262 = vmatprep.subr.mxu0 0.0
    %263 = vmatpush1.msra.mxu0 0.0
    %264 = vmatprep.subr.mxu0 0.0
    %265 = vmatpush1.msra.mxu0 0.0
    %266 = vmatprep.subr.mxu0 0.0
    %267 = vmatpush1.msra.mxu0 0.0
    %268 = vmatprep.subr.mxu0 0.0
    %269 = vmatpush1.msra.mxu0 0.0
    %270 = vmatprep.subr.mxu0 0.0
    %271 = vmatpush1.msra.mxu0 0.0
    %272 = vmatprep.subr.mxu0 0.0
    %273 = vmatpush1.msra.mxu0 0.0
    %274 = vmatprep.subr.mxu0 0.0
    %275 = vmatpush1.msra.mxu0 0.0
    %276 = vmatprep.subr.mxu0 0.0
    %277 = vmatpush1.msra.mxu0 0.0
    %278 = vmatprep.mubr.f32.mxu0 0.0
    %279 = vmatmul.mubr.f32.gmra.mrb[0].mxu0 %v191
    %v280 = vpop.f32.mrb[0].mxu0
    %v281 = vadd.f32 %v187, %v280
    %v282 = vpop.f32.mrb[0].mxu0
    %283 = vmatprep.mubr.f32.mxu0 0.0
    %284 = vmatmul.mubr.f32.gmra.mrb[0].mxu0 %v194
    %v285 = vpop.f32.mrb[0].mxu0
    %v286 = vadd.f32 %v187, %v285
    %v287 = vpop.f32.mrb[0].mxu0
    %288 = vmatprep.mubr.f32.mxu0 0.0
    %289 = vmatmul.mubr.f32.gmra.mrb[0].mxu0 %v197
    %v290 = vpop.f32.mrb[0].mxu0
    %v291 = vadd.f32 %v187, %v290
    %v292 = vpop.f32.mrb[0].mxu0
    %293 = vmatprep.mubr.f32.mxu0 0.0
    %294 = vmatmul.mubr.f32.gmra.mrb[0].mxu0 %v200
    %v295 = vpop.f32.mrb[0].mxu0
    %v296 = vadd.f32 %v187, %v295
    %v297 = vpop.f32.mrb[0].mxu0
    %298 = vmatprep.mubr.f32.mxu0 0.0
    %299 = vmatmul.mubr.f32.gmra.mrb[0].mxu0 %v203
    %v300 = vpop.f32.mrb[0].mxu0
    %v301 = vadd.f32 %v187, %v300
    %v302 = vpop.f32.mrb[0].mxu0
    %303 = vmatprep.mubr.f32.mxu0 0.0
    %304 = vmatmul.mubr.f32.gmra.mrb[0].mxu0 %v206
    %v305 = vpop.f32.mrb[0].mxu0
    %v306 = vadd.f32 %v187, %v305
    %v307 = vpop.f32.mrb[0].mxu0
    %308 = vmatprep.mubr.f32.mxu0 0.0
    %309 = vmatmul.mubr.f32.gmra.mrb[0].mxu0 %v209
    %v310 = vpop.f32.mrb[0].mxu0
    %v311 = vadd.f32 %v187, %v310
    %v312 = vpop.f32.mrb[0].mxu0
    %313 = vmatprep.mubr.f32.mxu0 0.0
    %314 = vmatmul.mubr.f32.gmra.mrb[0].mxu0 %v212
    %v315 = vpop.f32.mrb[0].mxu0
    %v316 = vadd.f32 %v187, %v315
    %v317 = vpop.f32.mrb[0].mxu0
    %318 = vdwg.mxu0
    %v319 = vsub.f32 0.0, %v281
    %v320 = vsub.f32 0.0, %v286
    %v321 = vsub.f32 0.0, %v291
    %v322 = vsub.f32 0.0, %v296
    %v323 = vsub.f32 0.0, %v301
    %v324 = vsub.f32 0.0, %v306
    %v325 = vsub.f32 0.0, %v311
    %v326 = vsub.f32 0.0, %v316
    %v327 = vmul.f32 %v319, 1.442695
    %v328 = vpow.pop %v327
    %v329 = vmul.f32 %v320, 1.442695
    %v330 = vpow.pop %v329
    %v331 = vmul.f32 %v321, 1.442695
    %v332 = vpow.pop %v331
    %v333 = vmul.f32 %v322, 1.442695
    %v334 = vpow.pop %v333
    %v335 = vmul.f32 %v323, 1.442695
    %v336 = vpow.pop %v335
    %v337 = vmul.f32 %v324, 1.442695
    %v338 = vpow.pop %v337
    %v339 = vmul.f32 %v325, 1.442695
    %v340 = vpow.pop %v339
    %v341 = vmul.f32 %v326, 1.442695
    %v342 = vpow.pop %v341
    %v343 = vadd.f32 %v328, 1.0
    %v344 = vadd.f32 %v330, 1.0
    %v345 = vadd.f32 %v332, 1.0
    %v346 = vadd.f32 %v334, 1.0
    %v347 = vadd.f32 %v336, 1.0
    %v348 = vadd.f32 %v338, 1.0
    %v349 = vadd.f32 %v340, 1.0
    %v350 = vadd.f32 %v342, 1.0
    %v351 = vrcp.pop %v343
    %v352 = vmul.f32 1.0, %v351
    %v353 = vrcp.pop %v344
    %v354 = vmul.f32 1.0, %v353
    %v355 = vrcp.pop %v345
    %v356 = vmul.f32 1.0, %v355
    %v357 = vrcp.pop %v346
    %v358 = vmul.f32 1.0, %v357
    %v359 = vrcp.pop %v347
    %v360 = vmul.f32 1.0, %v359
    %v361 = vrcp.pop %v348
    %v362 = vmul.f32 1.0, %v361
    %v363 = vrcp.pop %v349
    %v364 = vmul.f32 1.0, %v363
    %v365 = vrcp.pop %v350
    %v366 = vmul.f32 1.0, %v365
    %367 = vst.msk [vmem:[%s5] sm:$0xff] %vm189, %v352
    %368 = vst.msk [vmem:[%s5 + $0x8] sm:$0xff] %vm189, %v354
    %369 = vst.msk [vmem:[%s5 + $0x10] sm:$0xff] %vm189, %v356
    %370 = vst.msk [vmem:[%s5 + $0x18] sm:$0xff] %vm189, %v358
    %371 = vst.msk [vmem:[%s5 + $0x20] sm:$0xff] %vm189, %v360
    %372 = vst.msk [vmem:[%s5 + $0x28] sm:$0xff] %vm189, %v362
    %373 = vst.msk [vmem:[%s5 + $0x30] sm:$0xff] %vm189, %v364
    %374 = vst.msk [vmem:[%s5 + $0x38] sm:$0xff] %vm189, %v366
    %375 = vxpose.xlu0.b32.start [1/16] %v352, 128
    %376 = vxpose.xlu0.b32.cont [2/16] %v354, 128
    %377 = vxpose.xlu0.b32.cont [3/16] %v356, 128
    %378 = vxpose.xlu0.b32.cont [4/16] %v358, 128
    %379 = vxpose.xlu0.b32.cont [5/16] %v360, 128
    %380 = vxpose.xlu0.b32.cont [6/16] %v362, 128
    %381 = vxpose.xlu0.b32.cont [7/16] %v364, 128
    %382 = vxpose.xlu0.b32.cont [8/16] %v366, 128
    %383 = vxpose.xlu0.b32.cont [9/16] 0.0, 128
    %384 = vxpose.xlu0.b32.cont [10/16] 0.0, 128
    %385 = vxpose.xlu0.b32.cont [11/16] 0.0, 128
    %386 = vxpose.xlu0.b32.cont [12/16] 0.0, 128
    %387 = vxpose.xlu0.b32.cont [13/16] 0.0, 128
    %388 = vxpose.xlu0.b32.cont [14/16] 0.0, 128
    %389 = vxpose.xlu0.b32.cont [15/16] 0.0, 128
    %390 = vxpose.xlu0.b32.end [16/16] 0.0, 128
    %v391 = vpop.trf.xlu0
    %v392 = vpop.trf.xlu0
    %v393 = vpop.trf.xlu0
    %v394 = vpop.trf.xlu0
    %v395 = vpop.trf.xlu0
    %v396 = vpop.trf.xlu0
    %v397 = vpop.trf.xlu0
    %v398 = vpop.trf.xlu0
    %v399 = vpop.trf.xlu0
    %v400 = vpop.trf.xlu0
    %v401 = vpop.trf.xlu0
    %v402 = vpop.trf.xlu0
    %v403 = vpop.trf.xlu0
    %v404 = vpop.trf.xlu0
    %v405 = vpop.trf.xlu0
    %v406 = vpop.trf.xlu0
    %vm407 = vcmask 523264
    %408 = vst.msk [vmem:[#allocation2] sm:$0xff] %vm407, %v391
    %409 = vst.msk [vmem:[#allocation2 + $0x8] sm:$0xff] %vm407, %v392
    %410 = vst.msk [vmem:[#allocation2 + $0x10] sm:$0xff] %vm407, %v393
    %411 = vst.msk [vmem:[#allocation2 + $0x18] sm:$0xff] %vm407, %v394
    // Predicated region
    $region22: #{tpu_custom_call.1} parent=1 // pred_check
      _
    $region23: #{tpu_custom_call.1} parent=1 // pred_check_branch
      %413 = sbr.rel (0) target = $region25
    $region24: #{tpu_custom_call.1} parent=1 // pred_region
      _
    $region25: #{tpu_custom_call.1} parent=1 // pred_fallthru
      _
    // Predicated region
    $region26: #{tpu_custom_call.1} parent=1 // pred_check
      _
    $region27: #{tpu_custom_call.1} parent=1 // pred_check_branch
      %415 = sbr.rel (0) target = $region29
    $region28: #{tpu_custom_call.1} parent=1 // pred_region
      %s417 = ssub.s32 512, 512
      %418 = vsyncadd [#allocation3], %s417
      %s419 = sshll.u32 [#allocation2], 4
      %s420 = int_to_ptr.vmem [resolvable:$true] %s419
      %425 = dma.vmem_to_hbm [thread:$0]  %s420, 512, %s6, [#allocation3], 128, 128, 8
    $region29: #{tpu_custom_call.1} parent=1 // pred_fallthru
      _
    // Predicated region
    $region30: #{tpu_custom_call.1} parent=1 // pred_check
      _
    $region31: #{tpu_custom_call.1} parent=1 // pred_check_branch
      %427 = sbr.rel (0) target = $region33
    $region32: #{tpu_custom_call.1} parent=1 // pred_region
      _
    $region33: #{tpu_custom_call.1} parent=1 // pred_fallthru
      _
    // Predicated region
    $region34: #{tpu_custom_call.1} parent=1 // pred_check
      _
    $region35: #{tpu_custom_call.1} parent=1 // pred_check_branch
      %429 = sbr.rel (0) target = $region37
    $region36: #{tpu_custom_call.1} parent=1 // pred_region
      %430 = dma.done [#allocation3], 512
    $region37: #{tpu_custom_call.1} parent=1 // pred_fallthru
      _
    %431 = vsyncpa [#allocation3], 1

</llo_original>
